<compile_context>
chip_gen: v7x
topology: tpu7x:2x2x1
jax: 0.10.0
libtpu: 0.0.40
codegen_flags: <defaults>
</compile_context>

<pallas_src>
import functools

import jax
import jax.numpy as jnp
from jax import lax
from jax.experimental import pallas as pl
from jax.experimental.pallas import tpu as pltpu


# ----------------------------------------------------------------------------
# Pallas kernel: full LSTM recurrence + linear head, one invocation.
# ----------------------------------------------------------------------------
def lstm_fused_kernel(x_ref, w_ref, b_ref, wht_ref, bht_ref,
                      out_ref, tgt_ref, *, last_row):
    """Runs all T time steps and the target head in a single kernel.

    x_ref   : (T, Bp, E)    time-major inputs (batch zero-padded to Bp)
    w_ref   : (E+H, 4H)     packed gate weights [w_ih.T ; w_hh.T], gates i,f,g,o
    b_ref   : (1, 4H)       combined bias (b_ih + b_hh)
    wht_ref : (H, TGT)      head weights (transposed)
    bht_ref : (1, TGT)      head bias
    out_ref : (T, Bp, H)    all hidden states (written once per step, resident
                            in VMEM, flushed to HBM once at kernel end)
    tgt_ref : (1, TGT)      head output = out[0, last_row] @ wht + bht
    """
    T, Bp, _ = x_ref.shape
    H = wht_ref.shape[0]

    # Load weights once; hoist the bias broadcast out of the unrolled loop
    # (JAX does not CSE broadcast_in_dim).
    w = w_ref[...]                                      # (E+H, 4H)
    b_bc = jnp.broadcast_to(b_ref[...], (Bp, 4 * H))    # (Bp, 4H)

    def step(t, carry):
        h, c = carry
        x_t = x_ref[t]                                   # (Bp, E)
        xh = jnp.concatenate([x_t, h], axis=1)           # (Bp, E+H)
        gates = jnp.dot(xh, w, preferred_element_type=jnp.float32) + b_bc
        i_g = jax.nn.sigmoid(gates[:, 0 * H:1 * H])
        f_g = jax.nn.sigmoid(gates[:, 1 * H:2 * H])
        g_g = jnp.tanh(gates[:, 2 * H:3 * H])
        o_g = jax.nn.sigmoid(gates[:, 3 * H:4 * H])
        c_new = f_g * c + i_g * g_g
        h_new = o_g * jnp.tanh(c_new)
        out_ref[t] = h_new.astype(out_ref.dtype)
        return (h_new, c_new)

    init = (jnp.zeros((Bp, H), jnp.float32),
            jnp.zeros((Bp, H), jnp.float32))
    lax.fori_loop(0, T, step, init, unroll=True)

    # Fused head: target = lstm_out[0][-1] @ w_ht.T + b_ht  (t = 0, last real
    # batch row == seq_length - 1; padded rows are ignored).
    h_t0 = out_ref[0]                                    # (Bp, H)
    v = h_t0[last_row:last_row + 1, :]                   # (1, H)
    tgt_ref[...] = (
        jnp.dot(v, wht_ref[...], preferred_element_type=jnp.float32)
        + bht_ref[...]
    )


# ----------------------------------------------------------------------------
# Wrappers
# ----------------------------------------------------------------------------
def pack_lstm_params(w_ih, w_hh, b_ih, b_hh, w_ht, b_ht):
    """One-time (outside the jit-hot path) layout prep for the kernel."""
    w_cat = jnp.concatenate([w_ih.T, w_hh.T], axis=0)    # (E+H, 4H)
    bias = (b_ih + b_hh).reshape(1, -1)                  # (1, 4H)
    wht_t = w_ht.T                                       # (H, TGT)
    bht = b_ht.reshape(1, -1)                            # (1, TGT)
    return w_cat, bias, wht_t, bht


@jax.jit
def lstm_forward(inputs, w_cat, bias, wht_t, bht):
    """Mirrors LSTM.forward: returns (lstm_out, hidden2target(lstm_out[0][-1]))."""
    T, B, E = inputs.shape
    H = wht_t.shape[0]
    TGT = wht_t.shape[1]

    # Pad the LSTM batch (== seq_length) to the 8-sublane grain.
    Bp = 8 * pl.cdiv(B, 8)
    x_pad = inputs if Bp == B else jnp.pad(inputs, ((0, 0), (0, Bp - B), (0, 0)))

    kernel = functools.partial(lstm_fused_kernel, last_row=B - 1)

    vmem = pl.BlockSpec(memory_space=pltpu.MemorySpace.VMEM)
    lstm_out_p, target = pl.pallas_call(
        kernel,
        out_shape=(
            jax.ShapeDtypeStruct((T, Bp, H), jnp.float32),
            jax.ShapeDtypeStruct((1, TGT), jnp.float32),
        ),
        in_specs=[vmem, vmem, vmem, vmem, vmem],
        out_specs=(vmem, vmem),
    )(x_pad, w_cat, bias, wht_t, bht)

    return lstm_out_p[:, :B, :], target.reshape(-1)


# ----------------------------------------------------------------------------
# Pure-JAX reference (for correctness check only)
# ----------------------------------------------------------------------------
def lstm_reference(inputs, w_ih, w_hh, b_ih, b_hh, w_ht, b_ht):
    T, B, E = inputs.shape
    H = w_hh.shape[1]

    def step(carry, x_t):
        h, c = carry
        gates = x_t @ w_ih.T + b_ih + h @ w_hh.T + b_hh
        i = jax.nn.sigmoid(gates[:, 0 * H:1 * H])
        f = jax.nn.sigmoid(gates[:, 1 * H:2 * H])
        g = jnp.tanh(gates[:, 2 * H:3 * H])
        o = jax.nn.sigmoid(gates[:, 3 * H:4 * H])
        c = f * c + i * g
        h = o * jnp.tanh(c)
        return (h, c), h

    h0 = jnp.zeros((B, H), jnp.float32)
    c0 = jnp.zeros((B, H), jnp.float32)
    _, hs = jax.lax.scan(step, (h0, c0), inputs)
    v = hs[0, B - 1, :]
    return hs, v @ w_ht.T + b_ht


# ----------------------------------------------------------------------------
# Main
# ----------------------------------------------------------------------------
if __name__ == "__main__":
    # Small shapes consistent with the module:
    #   embedding_dim=16, seq_length(=LSTM batch)=6, hidden_dim=32, target=8,
    #   number of time steps T=8.
    E, B, H, TGT, T = 16, 6, 32, 8, 8

    key = jax.random.PRNGKey(0)
    ks = jax.random.split(key, 8)
    bound = 1.0 / jnp.sqrt(H)

    # nn.LSTM parameters (gate order i, f, g, o) and nn.Linear parameters.
    w_ih = jax.random.uniform(ks[0], (4 * H, E), jnp.float32, -bound, bound)
    w_hh = jax.random.uniform(ks[1], (4 * H, H), jnp.float32, -bound, bound)
    b_ih = jax.random.uniform(ks[2], (4 * H,), jnp.float32, -bound, bound)
    b_hh = jax.random.uniform(ks[3], (4 * H,), jnp.float32, -bound, bound)
    w_ht = jax.random.uniform(ks[4], (TGT, H), jnp.float32, -bound, bound)
    b_ht = jax.random.uniform(ks[5], (TGT,), jnp.float32, -bound, bound)

    inputs = jax.random.normal(ks[6], (T, B, E), jnp.float32)

    packed = pack_lstm_params(w_ih, w_hh, b_ih, b_hh, w_ht, b_ht)
    lstm_out, target = lstm_forward(inputs, *packed)
    jax.block_until_ready((lstm_out, target))

    ref_out, ref_target = lstm_reference(inputs, w_ih, w_hh, b_ih, b_hh,
                                         w_ht, b_ht)
    assert lstm_out.shape == (T, B, H)
    assert target.shape == (TGT,)
    assert jnp.allclose(lstm_out, ref_out, atol=1e-5, rtol=1e-5)
    assert jnp.allclose(target, ref_target, atol=1e-5, rtol=1e-5)

    print("KERNEL_OK")
</pallas_src>

<mosaic_0001>
module attributes {stable_mosaic.version = 11 : i64} {
  func.func @lstm_fused_kernel(%arg0: memref<8x8x16xf32, #tpu.memory_space<vmem>>, %arg1: memref<48x128xf32, #tpu.memory_space<vmem>>, %arg2: memref<1x128xf32, #tpu.memory_space<vmem>>, %arg3: memref<32x8xf32, #tpu.memory_space<vmem>>, %arg4: memref<1x8xf32, #tpu.memory_space<vmem>>, %arg5: memref<8x8x32xf32, #tpu.memory_space<vmem>>, %arg6: memref<1x8xf32, #tpu.memory_space<vmem>>) attributes {dimension_semantics = [], scalar_prefetch = 0 : i64, scratch_operands = 0 : i64, tpu.core_type = #tpu.core_type<tc>} {
    %c0 = arith.constant 0 : index
    %c0_0 = arith.constant 0 : index
    %0 = vector.load %arg1[%c0, %c0_0] : memref<48x128xf32, #tpu.memory_space<vmem>>, vector<48x128xf32>
    %c0_1 = arith.constant 0 : index
    %c0_2 = arith.constant 0 : index
    %1 = vector.load %arg2[%c0_1, %c0_2] : memref<1x128xf32, #tpu.memory_space<vmem>>, vector<1x128xf32>
    %2 = vector.shape_cast %1 : vector<1x128xf32> to vector<1x128xf32>
    %3 = vector.broadcast %2 : vector<1x128xf32> to vector<8x128xf32>
    %cst = arith.constant 0.000000e+00 : f32
    %4 = vector.broadcast %cst : f32 to vector<8x32xf32>
    %cst_3 = arith.constant 0.000000e+00 : f32
    %5 = vector.broadcast %cst_3 : f32 to vector<8x32xf32>
    %c0_i32 = arith.constant 0 : i32
    %6 = arith.index_cast %c0_i32 : i32 to index
    %c0_4 = arith.constant 0 : index
    %c0_5 = arith.constant 0 : index
    %7 = vector.load %arg0[%6, %c0_4, %c0_5] : memref<8x8x16xf32, #tpu.memory_space<vmem>>, vector<1x8x16xf32>
    %8 = vector.shape_cast %7 : vector<1x8x16xf32> to vector<8x16xf32>
    %9 = tpu.concatenate %8, %4 in 1 : vector<8x16xf32>, vector<8x32xf32> -> vector<8x48xf32>
    %cst_6 = arith.constant dense<0.000000e+00> : vector<8x128xf32>
    %10 = tpu.matmul %9, %0, %cst_6 {dimension_numbers = #tpu.dot_dimension_numbers<[1], [0], [0], [1], [0, 0, 1, 1], [], []>} : vector<8x48xf32>, vector<48x128xf32>, vector<8x128xf32> -> vector<8x128xf32>
    %11 = arith.addf %10, %3 : vector<8x128xf32>
    %12 = vector.extract_strided_slice %11 {offsets = [0, 0], sizes = [8, 32], strides = [1, 1]} : vector<8x128xf32> to vector<8x32xf32>
    %13 = arith.negf %12 : vector<8x32xf32>
    %14 = math.exp %13 : vector<8x32xf32>
    %cst_7 = arith.constant 1.000000e+00 : f32
    %15 = vector.broadcast %cst_7 : f32 to vector<8x32xf32>
    %16 = arith.addf %15, %14 : vector<8x32xf32>
    %17 = arith.divf %15, %16 : vector<8x32xf32>
    %18 = vector.extract_strided_slice %11 {offsets = [0, 32], sizes = [8, 32], strides = [1, 1]} : vector<8x128xf32> to vector<8x32xf32>
    %19 = arith.negf %18 : vector<8x32xf32>
    %20 = math.exp %19 : vector<8x32xf32>
    %cst_8 = arith.constant 1.000000e+00 : f32
    %21 = vector.broadcast %cst_8 : f32 to vector<8x32xf32>
    %22 = arith.addf %21, %20 : vector<8x32xf32>
    %23 = arith.divf %21, %22 : vector<8x32xf32>
    %24 = vector.extract_strided_slice %11 {offsets = [0, 64], sizes = [8, 32], strides = [1, 1]} : vector<8x128xf32> to vector<8x32xf32>
    %25 = math.tanh %24 : vector<8x32xf32>
    %26 = vector.extract_strided_slice %11 {offsets = [0, 96], sizes = [8, 32], strides = [1, 1]} : vector<8x128xf32> to vector<8x32xf32>
    %27 = arith.negf %26 : vector<8x32xf32>
    %28 = math.exp %27 : vector<8x32xf32>
    %cst_9 = arith.constant 1.000000e+00 : f32
    %29 = vector.broadcast %cst_9 : f32 to vector<8x32xf32>
    %30 = arith.addf %29, %28 : vector<8x32xf32>
    %31 = arith.divf %29, %30 : vector<8x32xf32>
    %32 = arith.mulf %23, %5 : vector<8x32xf32>
    %33 = arith.mulf %17, %25 : vector<8x32xf32>
    %34 = arith.addf %32, %33 : vector<8x32xf32>
    %35 = math.tanh %34 : vector<8x32xf32>
    %36 = arith.mulf %31, %35 : vector<8x32xf32>
    %37 = arith.index_cast %c0_i32 : i32 to index
    %c0_10 = arith.constant 0 : index
    %c0_11 = arith.constant 0 : index
    %38 = vector.load %arg5[%37, %c0_10, %c0_11] : memref<8x8x32xf32, #tpu.memory_space<vmem>>, vector<1x8x32xf32>
    %39 = vector.shape_cast %38 : vector<1x8x32xf32> to vector<8x32xf32>
    %40 = vector.shape_cast %36 : vector<8x32xf32> to vector<1x8x32xf32>
    tpu.vector_store %arg5[%37, %c0_10, %c0_11], %40 {strides = array<i32>} : memref<8x8x32xf32, #tpu.memory_space<vmem>>, vector<1x8x32xf32>,
    %c1_i32 = arith.constant 1 : i32
    %41 = arith.index_cast %c1_i32 : i32 to index
    %c0_12 = arith.constant 0 : index
    %c0_13 = arith.constant 0 : index
    %42 = vector.load %arg0[%41, %c0_12, %c0_13] : memref<8x8x16xf32, #tpu.memory_space<vmem>>, vector<1x8x16xf32>
    %43 = vector.shape_cast %42 : vector<1x8x16xf32> to vector<8x16xf32>
    %44 = tpu.concatenate %43, %36 in 1 : vector<8x16xf32>, vector<8x32xf32> -> vector<8x48xf32>
    %cst_14 = arith.constant dense<0.000000e+00> : vector<8x128xf32>
    %45 = tpu.matmul %44, %0, %cst_14 {dimension_numbers = #tpu.dot_dimension_numbers<[1], [0], [0], [1], [0, 0, 1, 1], [], []>} : vector<8x48xf32>, vector<48x128xf32>, vector<8x128xf32> -> vector<8x128xf32>
    %46 = arith.addf %45, %3 : vector<8x128xf32>
    %47 = vector.extract_strided_slice %46 {offsets = [0, 0], sizes = [8, 32], strides = [1, 1]} : vector<8x128xf32> to vector<8x32xf32>
    %48 = arith.negf %47 : vector<8x32xf32>
    %49 = math.exp %48 : vector<8x32xf32>
    %cst_15 = arith.constant 1.000000e+00 : f32
    %50 = vector.broadcast %cst_15 : f32 to vector<8x32xf32>
    %51 = arith.addf %50, %49 : vector<8x32xf32>
    %52 = arith.divf %50, %51 : vector<8x32xf32>
    %53 = vector.extract_strided_slice %46 {offsets = [0, 32], sizes = [8, 32], strides = [1, 1]} : vector<8x128xf32> to vector<8x32xf32>
    %54 = arith.negf %53 : vector<8x32xf32>
    %55 = math.exp %54 : vector<8x32xf32>
    %cst_16 = arith.constant 1.000000e+00 : f32
    %56 = vector.broadcast %cst_16 : f32 to vector<8x32xf32>
    %57 = arith.addf %56, %55 : vector<8x32xf32>
    %58 = arith.divf %56, %57 : vector<8x32xf32>
    %59 = vector.extract_strided_slice %46 {offsets = [0, 64], sizes = [8, 32], strides = [1, 1]} : vector<8x128xf32> to vector<8x32xf32>
    %60 = math.tanh %59 : vector<8x32xf32>
    %61 = vector.extract_strided_slice %46 {offsets = [0, 96], sizes = [8, 32], strides = [1, 1]} : vector<8x128xf32> to vector<8x32xf32>
    %62 = arith.negf %61 : vector<8x32xf32>
    %63 = math.exp %62 : vector<8x32xf32>
    %cst_17 = arith.constant 1.000000e+00 : f32
    %64 = vector.broadcast %cst_17 : f32 to vector<8x32xf32>
    %65 = arith.addf %64, %63 : vector<8x32xf32>
    %66 = arith.divf %64, %65 : vector<8x32xf32>
    %67 = arith.mulf %58, %34 : vector<8x32xf32>
    %68 = arith.mulf %52, %60 : vector<8x32xf32>
    %69 = arith.addf %67, %68 : vector<8x32xf32>
    %70 = math.tanh %69 : vector<8x32xf32>
    %71 = arith.mulf %66, %70 : vector<8x32xf32>
    %72 = arith.index_cast %c1_i32 : i32 to index
    %c0_18 = arith.constant 0 : index
    %c0_19 = arith.constant 0 : index
    %73 = vector.load %arg5[%72, %c0_18, %c0_19] : memref<8x8x32xf32, #tpu.memory_space<vmem>>, vector<1x8x32xf32>
    %74 = vector.shape_cast %73 : vector<1x8x32xf32> to vector<8x32xf32>
    %75 = vector.shape_cast %71 : vector<8x32xf32> to vector<1x8x32xf32>
    tpu.vector_store %arg5[%72, %c0_18, %c0_19], %75 {strides = array<i32>} : memref<8x8x32xf32, #tpu.memory_space<vmem>>, vector<1x8x32xf32>,
    %c2_i32 = arith.constant 2 : i32
    %76 = arith.index_cast %c2_i32 : i32 to index
    %c0_20 = arith.constant 0 : index
    %c0_21 = arith.constant 0 : index
    %77 = vector.load %arg0[%76, %c0_20, %c0_21] : memref<8x8x16xf32, #tpu.memory_space<vmem>>, vector<1x8x16xf32>
    %78 = vector.shape_cast %77 : vector<1x8x16xf32> to vector<8x16xf32>
    %79 = tpu.concatenate %78, %71 in 1 : vector<8x16xf32>, vector<8x32xf32> -> vector<8x48xf32>
    %cst_22 = arith.constant dense<0.000000e+00> : vector<8x128xf32>
    %80 = tpu.matmul %79, %0, %cst_22 {dimension_numbers = #tpu.dot_dimension_numbers<[1], [0], [0], [1], [0, 0, 1, 1], [], []>} : vector<8x48xf32>, vector<48x128xf32>, vector<8x128xf32> -> vector<8x128xf32>
    %81 = arith.addf %80, %3 : vector<8x128xf32>
    %82 = vector.extract_strided_slice %81 {offsets = [0, 0], sizes = [8, 32], strides = [1, 1]} : vector<8x128xf32> to vector<8x32xf32>
    %83 = arith.negf %82 : vector<8x32xf32>
    %84 = math.exp %83 : vector<8x32xf32>
    %cst_23 = arith.constant 1.000000e+00 : f32
    %85 = vector.broadcast %cst_23 : f32 to vector<8x32xf32>
    %86 = arith.addf %85, %84 : vector<8x32xf32>
    %87 = arith.divf %85, %86 : vector<8x32xf32>
    %88 = vector.extract_strided_slice %81 {offsets = [0, 32], sizes = [8, 32], strides = [1, 1]} : vector<8x128xf32> to vector<8x32xf32>
    %89 = arith.negf %88 : vector<8x32xf32>
    %90 = math.exp %89 : vector<8x32xf32>
    %cst_24 = arith.constant 1.000000e+00 : f32
    %91 = vector.broadcast %cst_24 : f32 to vector<8x32xf32>
    %92 = arith.addf %91, %90 : vector<8x32xf32>
    %93 = arith.divf %91, %92 : vector<8x32xf32>
    %94 = vector.extract_strided_slice %81 {offsets = [0, 64], sizes = [8, 32], strides = [1, 1]} : vector<8x128xf32> to vector<8x32xf32>
    %95 = math.tanh %94 : vector<8x32xf32>
    %96 = vector.extract_strided_slice %81 {offsets = [0, 96], sizes = [8, 32], strides = [1, 1]} : vector<8x128xf32> to vector<8x32xf32>
    %97 = arith.negf %96 : vector<8x32xf32>
    %98 = math.exp %97 : vector<8x32xf32>
    %cst_25 = arith.constant 1.000000e+00 : f32
    %99 = vector.broadcast %cst_25 : f32 to vector<8x32xf32>
    %100 = arith.addf %99, %98 : vector<8x32xf32>
    %101 = arith.divf %99, %100 : vector<8x32xf32>
    %102 = arith.mulf %93, %69 : vector<8x32xf32>
    %103 = arith.mulf %87, %95 : vector<8x32xf32>
    %104 = arith.addf %102, %103 : vector<8x32xf32>
    %105 = math.tanh %104 : vector<8x32xf32>
    %106 = arith.mulf %101, %105 : vector<8x32xf32>
    %107 = arith.index_cast %c2_i32 : i32 to index
    %c0_26 = arith.constant 0 : index
    %c0_27 = arith.constant 0 : index
    %108 = vector.load %arg5[%107, %c0_26, %c0_27] : memref<8x8x32xf32, #tpu.memory_space<vmem>>, vector<1x8x32xf32>
    %109 = vector.shape_cast %108 : vector<1x8x32xf32> to vector<8x32xf32>
    %110 = vector.shape_cast %106 : vector<8x32xf32> to vector<1x8x32xf32>
    tpu.vector_store %arg5[%107, %c0_26, %c0_27], %110 {strides = array<i32>} : memref<8x8x32xf32, #tpu.memory_space<vmem>>, vector<1x8x32xf32>,
    %c3_i32 = arith.constant 3 : i32
    %111 = arith.index_cast %c3_i32 : i32 to index
    %c0_28 = arith.constant 0 : index
    %c0_29 = arith.constant 0 : index
    %112 = vector.load %arg0[%111, %c0_28, %c0_29] : memref<8x8x16xf32, #tpu.memory_space<vmem>>, vector<1x8x16xf32>
    %113 = vector.shape_cast %112 : vector<1x8x16xf32> to vector<8x16xf32>
    %114 = tpu.concatenate %113, %106 in 1 : vector<8x16xf32>, vector<8x32xf32> -> vector<8x48xf32>
    %cst_30 = arith.constant dense<0.000000e+00> : vector<8x128xf32>
    %115 = tpu.matmul %114, %0, %cst_30 {dimension_numbers = #tpu.dot_dimension_numbers<[1], [0], [0], [1], [0, 0, 1, 1], [], []>} : vector<8x48xf32>, vector<48x128xf32>, vector<8x128xf32> -> vector<8x128xf32>
    %116 = arith.addf %115, %3 : vector<8x128xf32>
    %117 = vector.extract_strided_slice %116 {offsets = [0, 0], sizes = [8, 32], strides = [1, 1]} : vector<8x128xf32> to vector<8x32xf32>
    %118 = arith.negf %117 : vector<8x32xf32>
    %119 = math.exp %118 : vector<8x32xf32>
    %cst_31 = arith.constant 1.000000e+00 : f32
    %120 = vector.broadcast %cst_31 : f32 to vector<8x32xf32>
    %121 = arith.addf %120, %119 : vector<8x32xf32>
    %122 = arith.divf %120, %121 : vector<8x32xf32>
    %123 = vector.extract_strided_slice %116 {offsets = [0, 32], sizes = [8, 32], strides = [1, 1]} : vector<8x128xf32> to vector<8x32xf32>
    %124 = arith.negf %123 : vector<8x32xf32>
    %125 = math.exp %124 : vector<8x32xf32>
    %cst_32 = arith.constant 1.000000e+00 : f32
    %126 = vector.broadcast %cst_32 : f32 to vector<8x32xf32>
    %127 = arith.addf %126, %125 : vector<8x32xf32>
    %128 = arith.divf %126, %127 : vector<8x32xf32>
    %129 = vector.extract_strided_slice %116 {offsets = [0, 64], sizes = [8, 32], strides = [1, 1]} : vector<8x128xf32> to vector<8x32xf32>
    %130 = math.tanh %129 : vector<8x32xf32>
    %131 = vector.extract_strided_slice %116 {offsets = [0, 96], sizes = [8, 32], strides = [1, 1]} : vector<8x128xf32> to vector<8x32xf32>
    %132 = arith.negf %131 : vector<8x32xf32>
    %133 = math.exp %132 : vector<8x32xf32>
    %cst_33 = arith.constant 1.000000e+00 : f32
    %134 = vector.broadcast %cst_33 : f32 to vector<8x32xf32>
    %135 = arith.addf %134, %133 : vector<8x32xf32>
    %136 = arith.divf %134, %135 : vector<8x32xf32>
    %137 = arith.mulf %128, %104 : vector<8x32xf32>
    %138 = arith.mulf %122, %130 : vector<8x32xf32>
    %139 = arith.addf %137, %138 : vector<8x32xf32>
    %140 = math.tanh %139 : vector<8x32xf32>
    %141 = arith.mulf %136, %140 : vector<8x32xf32>
    %142 = arith.index_cast %c3_i32 : i32 to index
    %c0_34 = arith.constant 0 : index
    %c0_35 = arith.constant 0 : index
    %143 = vector.load %arg5[%142, %c0_34, %c0_35] : memref<8x8x32xf32, #tpu.memory_space<vmem>>, vector<1x8x32xf32>
    %144 = vector.shape_cast %143 : vector<1x8x32xf32> to vector<8x32xf32>
    %145 = vector.shape_cast %141 : vector<8x32xf32> to vector<1x8x32xf32>
    tpu.vector_store %arg5[%142, %c0_34, %c0_35], %145 {strides = array<i32>} : memref<8x8x32xf32, #tpu.memory_space<vmem>>, vector<1x8x32xf32>,
    %c4_i32 = arith.constant 4 : i32
    %146 = arith.index_cast %c4_i32 : i32 to index
    %c0_36 = arith.constant 0 : index
    %c0_37 = arith.constant 0 : index
    %147 = vector.load %arg0[%146, %c0_36, %c0_37] : memref<8x8x16xf32, #tpu.memory_space<vmem>>, vector<1x8x16xf32>
    %148 = vector.shape_cast %147 : vector<1x8x16xf32> to vector<8x16xf32>
    %149 = tpu.concatenate %148, %141 in 1 : vector<8x16xf32>, vector<8x32xf32> -> vector<8x48xf32>
    %cst_38 = arith.constant dense<0.000000e+00> : vector<8x128xf32>
    %150 = tpu.matmul %149, %0, %cst_38 {dimension_numbers = #tpu.dot_dimension_numbers<[1], [0], [0], [1], [0, 0, 1, 1], [], []>} : vector<8x48xf32>, vector<48x128xf32>, vector<8x128xf32> -> vector<8x128xf32>
    %151 = arith.addf %150, %3 : vector<8x128xf32>
    %152 = vector.extract_strided_slice %151 {offsets = [0, 0], sizes = [8, 32], strides = [1, 1]} : vector<8x128xf32> to vector<8x32xf32>
    %153 = arith.negf %152 : vector<8x32xf32>
    %154 = math.exp %153 : vector<8x32xf32>
    %cst_39 = arith.constant 1.000000e+00 : f32
    %155 = vector.broadcast %cst_39 : f32 to vector<8x32xf32>
    %156 = arith.addf %155, %154 : vector<8x32xf32>
    %157 = arith.divf %155, %156 : vector<8x32xf32>
    %158 = vector.extract_strided_slice %151 {offsets = [0, 32], sizes = [8, 32], strides = [1, 1]} : vector<8x128xf32> to vector<8x32xf32>
    %159 = arith.negf %158 : vector<8x32xf32>
    %160 = math.exp %159 : vector<8x32xf32>
    %cst_40 = arith.constant 1.000000e+00 : f32
    %161 = vector.broadcast %cst_40 : f32 to vector<8x32xf32>
    %162 = arith.addf %161, %160 : vector<8x32xf32>
    %163 = arith.divf %161, %162 : vector<8x32xf32>
    %164 = vector.extract_strided_slice %151 {offsets = [0, 64], sizes = [8, 32], strides = [1, 1]} : vector<8x128xf32> to vector<8x32xf32>
    %165 = math.tanh %164 : vector<8x32xf32>
    %166 = vector.extract_strided_slice %151 {offsets = [0, 96], sizes = [8, 32], strides = [1, 1]} : vector<8x128xf32> to vector<8x32xf32>
    %167 = arith.negf %166 : vector<8x32xf32>
    %168 = math.exp %167 : vector<8x32xf32>
    %cst_41 = arith.constant 1.000000e+00 : f32
    %169 = vector.broadcast %cst_41 : f32 to vector<8x32xf32>
    %170 = arith.addf %169, %168 : vector<8x32xf32>
    %171 = arith.divf %169, %170 : vector<8x32xf32>
    %172 = arith.mulf %163, %139 : vector<8x32xf32>
    %173 = arith.mulf %157, %165 : vector<8x32xf32>
    %174 = arith.addf %172, %173 : vector<8x32xf32>
    %175 = math.tanh %174 : vector<8x32xf32>
    %176 = arith.mulf %171, %175 : vector<8x32xf32>
    %177 = arith.index_cast %c4_i32 : i32 to index
    %c0_42 = arith.constant 0 : index
    %c0_43 = arith.constant 0 : index
    %178 = vector.load %arg5[%177, %c0_42, %c0_43] : memref<8x8x32xf32, #tpu.memory_space<vmem>>, vector<1x8x32xf32>
    %179 = vector.shape_cast %178 : vector<1x8x32xf32> to vector<8x32xf32>
    %180 = vector.shape_cast %176 : vector<8x32xf32> to vector<1x8x32xf32>
    tpu.vector_store %arg5[%177, %c0_42, %c0_43], %180 {strides = array<i32>} : memref<8x8x32xf32, #tpu.memory_space<vmem>>, vector<1x8x32xf32>,
    %c5_i32 = arith.constant 5 : i32
    %181 = arith.index_cast %c5_i32 : i32 to index
    %c0_44 = arith.constant 0 : index
    %c0_45 = arith.constant 0 : index
    %182 = vector.load %arg0[%181, %c0_44, %c0_45] : memref<8x8x16xf32, #tpu.memory_space<vmem>>, vector<1x8x16xf32>
    %183 = vector.shape_cast %182 : vector<1x8x16xf32> to vector<8x16xf32>
    %184 = tpu.concatenate %183, %176 in 1 : vector<8x16xf32>, vector<8x32xf32> -> vector<8x48xf32>
    %cst_46 = arith.constant dense<0.000000e+00> : vector<8x128xf32>
    %185 = tpu.matmul %184, %0, %cst_46 {dimension_numbers = #tpu.dot_dimension_numbers<[1], [0], [0], [1], [0, 0, 1, 1], [], []>} : vector<8x48xf32>, vector<48x128xf32>, vector<8x128xf32> -> vector<8x128xf32>
    %186 = arith.addf %185, %3 : vector<8x128xf32>
    %187 = vector.extract_strided_slice %186 {offsets = [0, 0], sizes = [8, 32], strides = [1, 1]} : vector<8x128xf32> to vector<8x32xf32>
    %188 = arith.negf %187 : vector<8x32xf32>
    %189 = math.exp %188 : vector<8x32xf32>
    %cst_47 = arith.constant 1.000000e+00 : f32
    %190 = vector.broadcast %cst_47 : f32 to vector<8x32xf32>
    %191 = arith.addf %190, %189 : vector<8x32xf32>
    %192 = arith.divf %190, %191 : vector<8x32xf32>
    %193 = vector.extract_strided_slice %186 {offsets = [0, 32], sizes = [8, 32], strides = [1, 1]} : vector<8x128xf32> to vector<8x32xf32>
    %194 = arith.negf %193 : vector<8x32xf32>
    %195 = math.exp %194 : vector<8x32xf32>
    %cst_48 = arith.constant 1.000000e+00 : f32
    %196 = vector.broadcast %cst_48 : f32 to vector<8x32xf32>
    %197 = arith.addf %196, %195 : vector<8x32xf32>
    %198 = arith.divf %196, %197 : vector<8x32xf32>
    %199 = vector.extract_strided_slice %186 {offsets = [0, 64], sizes = [8, 32], strides = [1, 1]} : vector<8x128xf32> to vector<8x32xf32>
    %200 = math.tanh %199 : vector<8x32xf32>
    %201 = vector.extract_strided_slice %186 {offsets = [0, 96], sizes = [8, 32], strides = [1, 1]} : vector<8x128xf32> to vector<8x32xf32>
    %202 = arith.negf %201 : vector<8x32xf32>
    %203 = math.exp %202 : vector<8x32xf32>
    %cst_49 = arith.constant 1.000000e+00 : f32
    %204 = vector.broadcast %cst_49 : f32 to vector<8x32xf32>
    %205 = arith.addf %204, %203 : vector<8x32xf32>
    %206 = arith.divf %204, %205 : vector<8x32xf32>
    %207 = arith.mulf %198, %174 : vector<8x32xf32>
    %208 = arith.mulf %192, %200 : vector<8x32xf32>
    %209 = arith.addf %207, %208 : vector<8x32xf32>
    %210 = math.tanh %209 : vector<8x32xf32>
    %211 = arith.mulf %206, %210 : vector<8x32xf32>
    %212 = arith.index_cast %c5_i32 : i32 to index
    %c0_50 = arith.constant 0 : index
    %c0_51 = arith.constant 0 : index
    %213 = vector.load %arg5[%212, %c0_50, %c0_51] : memref<8x8x32xf32, #tpu.memory_space<vmem>>, vector<1x8x32xf32>
    %214 = vector.shape_cast %213 : vector<1x8x32xf32> to vector<8x32xf32>
    %215 = vector.shape_cast %211 : vector<8x32xf32> to vector<1x8x32xf32>
    tpu.vector_store %arg5[%212, %c0_50, %c0_51], %215 {strides = array<i32>} : memref<8x8x32xf32, #tpu.memory_space<vmem>>, vector<1x8x32xf32>,
    %c6_i32 = arith.constant 6 : i32
    %216 = arith.index_cast %c6_i32 : i32 to index
    %c0_52 = arith.constant 0 : index
    %c0_53 = arith.constant 0 : index
    %217 = vector.load %arg0[%216, %c0_52, %c0_53] : memref<8x8x16xf32, #tpu.memory_space<vmem>>, vector<1x8x16xf32>
    %218 = vector.shape_cast %217 : vector<1x8x16xf32> to vector<8x16xf32>
    %219 = tpu.concatenate %218, %211 in 1 : vector<8x16xf32>, vector<8x32xf32> -> vector<8x48xf32>
    %cst_54 = arith.constant dense<0.000000e+00> : vector<8x128xf32>
    %220 = tpu.matmul %219, %0, %cst_54 {dimension_numbers = #tpu.dot_dimension_numbers<[1], [0], [0], [1], [0, 0, 1, 1], [], []>} : vector<8x48xf32>, vector<48x128xf32>, vector<8x128xf32> -> vector<8x128xf32>
    %221 = arith.addf %220, %3 : vector<8x128xf32>
    %222 = vector.extract_strided_slice %221 {offsets = [0, 0], sizes = [8, 32], strides = [1, 1]} : vector<8x128xf32> to vector<8x32xf32>
    %223 = arith.negf %222 : vector<8x32xf32>
    %224 = math.exp %223 : vector<8x32xf32>
    %cst_55 = arith.constant 1.000000e+00 : f32
    %225 = vector.broadcast %cst_55 : f32 to vector<8x32xf32>
    %226 = arith.addf %225, %224 : vector<8x32xf32>
    %227 = arith.divf %225, %226 : vector<8x32xf32>
    %228 = vector.extract_strided_slice %221 {offsets = [0, 32], sizes = [8, 32], strides = [1, 1]} : vector<8x128xf32> to vector<8x32xf32>
    %229 = arith.negf %228 : vector<8x32xf32>
    %230 = math.exp %229 : vector<8x32xf32>
    %cst_56 = arith.constant 1.000000e+00 : f32
    %231 = vector.broadcast %cst_56 : f32 to vector<8x32xf32>
    %232 = arith.addf %231, %230 : vector<8x32xf32>
    %233 = arith.divf %231, %232 : vector<8x32xf32>
    %234 = vector.extract_strided_slice %221 {offsets = [0, 64], sizes = [8, 32], strides = [1, 1]} : vector<8x128xf32> to vector<8x32xf32>
    %235 = math.tanh %234 : vector<8x32xf32>
    %236 = vector.extract_strided_slice %221 {offsets = [0, 96], sizes = [8, 32], strides = [1, 1]} : vector<8x128xf32> to vector<8x32xf32>
    %237 = arith.negf %236 : vector<8x32xf32>
    %238 = math.exp %237 : vector<8x32xf32>
    %cst_57 = arith.constant 1.000000e+00 : f32
    %239 = vector.broadcast %cst_57 : f32 to vector<8x32xf32>
    %240 = arith.addf %239, %238 : vector<8x32xf32>
    %241 = arith.divf %239, %240 : vector<8x32xf32>
    %242 = arith.mulf %233, %209 : vector<8x32xf32>
    %243 = arith.mulf %227, %235 : vector<8x32xf32>
    %244 = arith.addf %242, %243 : vector<8x32xf32>
    %245 = math.tanh %244 : vector<8x32xf32>
    %246 = arith.mulf %241, %245 : vector<8x32xf32>
    %247 = arith.index_cast %c6_i32 : i32 to index
    %c0_58 = arith.constant 0 : index
    %c0_59 = arith.constant 0 : index
    %248 = vector.load %arg5[%247, %c0_58, %c0_59] : memref<8x8x32xf32, #tpu.memory_space<vmem>>, vector<1x8x32xf32>
    %249 = vector.shape_cast %248 : vector<1x8x32xf32> to vector<8x32xf32>
    %250 = vector.shape_cast %246 : vector<8x32xf32> to vector<1x8x32xf32>
    tpu.vector_store %arg5[%247, %c0_58, %c0_59], %250 {strides = array<i32>} : memref<8x8x32xf32, #tpu.memory_space<vmem>>, vector<1x8x32xf32>,
    %c7_i32 = arith.constant 7 : i32
    %251 = arith.index_cast %c7_i32 : i32 to index
    %c0_60 = arith.constant 0 : index
    %c0_61 = arith.constant 0 : index
    %252 = vector.load %arg0[%251, %c0_60, %c0_61] : memref<8x8x16xf32, #tpu.memory_space<vmem>>, vector<1x8x16xf32>
    %253 = vector.shape_cast %252 : vector<1x8x16xf32> to vector<8x16xf32>
    %254 = tpu.concatenate %253, %246 in 1 : vector<8x16xf32>, vector<8x32xf32> -> vector<8x48xf32>
    %cst_62 = arith.constant dense<0.000000e+00> : vector<8x128xf32>
    %255 = tpu.matmul %254, %0, %cst_62 {dimension_numbers = #tpu.dot_dimension_numbers<[1], [0], [0], [1], [0, 0, 1, 1], [], []>} : vector<8x48xf32>, vector<48x128xf32>, vector<8x128xf32> -> vector<8x128xf32>
    %256 = arith.addf %255, %3 : vector<8x128xf32>
    %257 = vector.extract_strided_slice %256 {offsets = [0, 0], sizes = [8, 32], strides = [1, 1]} : vector<8x128xf32> to vector<8x32xf32>
    %258 = arith.negf %257 : vector<8x32xf32>
    %259 = math.exp %258 : vector<8x32xf32>
    %cst_63 = arith.constant 1.000000e+00 : f32
    %260 = vector.broadcast %cst_63 : f32 to vector<8x32xf32>
    %261 = arith.addf %260, %259 : vector<8x32xf32>
    %262 = arith.divf %260, %261 : vector<8x32xf32>
    %263 = vector.extract_strided_slice %256 {offsets = [0, 32], sizes = [8, 32], strides = [1, 1]} : vector<8x128xf32> to vector<8x32xf32>
    %264 = arith.negf %263 : vector<8x32xf32>
    %265 = math.exp %264 : vector<8x32xf32>
    %cst_64 = arith.constant 1.000000e+00 : f32
    %266 = vector.broadcast %cst_64 : f32 to vector<8x32xf32>
    %267 = arith.addf %266, %265 : vector<8x32xf32>
    %268 = arith.divf %266, %267 : vector<8x32xf32>
    %269 = vector.extract_strided_slice %256 {offsets = [0, 64], sizes = [8, 32], strides = [1, 1]} : vector<8x128xf32> to vector<8x32xf32>
    %270 = math.tanh %269 : vector<8x32xf32>
    %271 = vector.extract_strided_slice %256 {offsets = [0, 96], sizes = [8, 32], strides = [1, 1]} : vector<8x128xf32> to vector<8x32xf32>
    %272 = arith.negf %271 : vector<8x32xf32>
    %273 = math.exp %272 : vector<8x32xf32>
    %cst_65 = arith.constant 1.000000e+00 : f32
    %274 = vector.broadcast %cst_65 : f32 to vector<8x32xf32>
    %275 = arith.addf %274, %273 : vector<8x32xf32>
    %276 = arith.divf %274, %275 : vector<8x32xf32>
    %277 = arith.mulf %268, %244 : vector<8x32xf32>
    %278 = arith.mulf %262, %270 : vector<8x32xf32>
    %279 = arith.addf %277, %278 : vector<8x32xf32>
    %280 = math.tanh %279 : vector<8x32xf32>
    %281 = arith.mulf %276, %280 : vector<8x32xf32>
    %282 = arith.index_cast %c7_i32 : i32 to index
    %c0_66 = arith.constant 0 : index
    %c0_67 = arith.constant 0 : index
    %283 = vector.load %arg5[%282, %c0_66, %c0_67] : memref<8x8x32xf32, #tpu.memory_space<vmem>>, vector<1x8x32xf32>
    %284 = vector.shape_cast %283 : vector<1x8x32xf32> to vector<8x32xf32>
    %285 = vector.shape_cast %281 : vector<8x32xf32> to vector<1x8x32xf32>
    tpu.vector_store %arg5[%282, %c0_66, %c0_67], %285 {strides = array<i32>} : memref<8x8x32xf32, #tpu.memory_space<vmem>>, vector<1x8x32xf32>,
    %c8_i32 = arith.constant 8 : i32
    %c0_68 = arith.constant 0 : index
    %c0_69 = arith.constant 0 : index
    %c0_70 = arith.constant 0 : index
    %286 = vector.load %arg5[%c0_68, %c0_69, %c0_70] : memref<8x8x32xf32, #tpu.memory_space<vmem>>, vector<1x8x32xf32>
    %287 = vector.shape_cast %286 : vector<1x8x32xf32> to vector<8x32xf32>
    %288 = vector.extract_strided_slice %287 {offsets = [5, 0], sizes = [1, 32], strides = [1, 1]} : vector<8x32xf32> to vector<1x32xf32>
    %c0_71 = arith.constant 0 : index
    %c0_72 = arith.constant 0 : index
    %289 = vector.load %arg3[%c0_71, %c0_72] : memref<32x8xf32, #tpu.memory_space<vmem>>, vector<32x8xf32>
    %cst_73 = arith.constant dense<0.000000e+00> : vector<1x8xf32>
    %290 = tpu.matmul %288, %289, %cst_73 {dimension_numbers = #tpu.dot_dimension_numbers<[1], [0], [0], [1], [0, 0, 1, 1], [], []>} : vector<1x32xf32>, vector<32x8xf32>, vector<1x8xf32> -> vector<1x8xf32>
    %c0_74 = arith.constant 0 : index
    %c0_75 = arith.constant 0 : index
    %291 = vector.load %arg4[%c0_74, %c0_75] : memref<1x8xf32, #tpu.memory_space<vmem>>, vector<1x8xf32>
    %292 = arith.addf %290, %291 : vector<1x8xf32>
    %c0_76 = arith.constant 0 : index
    %c0_77 = arith.constant 0 : index
    %293 = vector.load %arg6[%c0_76, %c0_77] : memref<1x8xf32, #tpu.memory_space<vmem>>, vector<1x8xf32>
    tpu.vector_store %arg6[%c0_76, %c0_77], %292 {strides = array<i32>} : memref<1x8xf32, #tpu.memory_space<vmem>>, vector<1x8xf32>,
    return
  }
}

</mosaic_0001>

<llo_original>
// kernel: lstm_forward.1
$region0: #{lstm_forward.1}
  #allocation0 [shape = 'u32[]', space=smem, size = 0x4, offset = 0x4, fixed_abs, tag = 'smem constant byte address 0x4 - core index']
  #allocation1 [shape = 'u32[144,128]{1,0:T(1,128)}', space=vmem, size = 0x12000, scoped, tag = 'internal scratch']
  %s0 = inlined_call_operand.vmem [shape: f32[8,8,16], index: 0, kind: input, shape index: {}]
  %s1 = inlined_call_operand.vmem [shape: f32[48,128], index: 1, kind: input, shape index: {}]
  %s2 = inlined_call_operand.vmem [shape: f32[1,128], index: 2, kind: input, shape index: {}]
  %s3 = inlined_call_operand.vmem [shape: f32[32,8], index: 3, kind: input, shape index: {}]
  %s4 = inlined_call_operand.vmem [shape: f32[1,8], index: 4, kind: input, shape index: {}]
  %s5 = inlined_call_operand.vmem [shape: f32[8,8,32], index: 5, kind: output, shape index: {0}]
  %s6 = inlined_call_operand.hbm [shape: f32[1,8], index: 6, kind: output, shape index: {1}]
  %7 = xla_tuple %s5, %s6
  %s8 = sld [smem:[#allocation0]]
  $region38: #{lstm_forward.1} parent=0
    _
  %s10 = ssub.s32 1, %s8
  %s11 = scalar_select 0, %s10, %s8
  $region1: #{lstm_forward.1} parent=0
    #allocation2 [shape = 'u8[512]{0}', space=vmem, size = 0x400, scoped, tag = 'output window, operand 1, single buffered']
    #allocation3 [shape = 's32[1]{0}', space=sflag, size = 0x4, scoped, tag = 'scoped memory for lstm_forward.1']
    %12 = vsyncpa [#allocation3], 0
    // Predicated region
    $region2: #{lstm_forward.1} parent=1 // pred_check
      _
    $region3: #{lstm_forward.1} parent=1 // pred_check_branch
      %14 = sbr.rel (0) target = $region5
    $region4: #{lstm_forward.1} parent=1 // pred_region
      _
    $region5: #{lstm_forward.1} parent=1 // pred_fallthru
      _
    // Predicated region
    $region6: #{lstm_forward.1} parent=1 // pred_check
      _
    $region7: #{lstm_forward.1} parent=1 // pred_check_branch
      %16 = sbr.rel (0) target = $region9
    $region8: #{lstm_forward.1} parent=1 // pred_region
      _
    $region9: #{lstm_forward.1} parent=1 // pred_fallthru
      _
    // Predicated region
    $region10: #{lstm_forward.1} parent=1 // pred_check
      _
    $region11: #{lstm_forward.1} parent=1 // pred_check_branch
      %18 = sbr.rel (0) target = $region13
    $region12: #{lstm_forward.1} parent=1 // pred_region
      _
    $region13: #{lstm_forward.1} parent=1 // pred_fallthru
      _
    // Predicated region
    $region14: #{lstm_forward.1} parent=1 // pred_check
      _
    $region15: #{lstm_forward.1} parent=1 // pred_check_branch
      %20 = sbr.rel (0) target = $region17
    $region16: #{lstm_forward.1} parent=1 // pred_region
      _
    $region17: #{lstm_forward.1} parent=1 // pred_fallthru
      _
    // Predicated region
    $region18: #{lstm_forward.1} parent=1 // pred_check
      _
    $region19: #{lstm_forward.1} parent=1 // pred_check_branch
      %22 = sbr.rel (0) target = $region21
    $region20: #{lstm_forward.1} parent=1 // pred_region
      _
    $region21: #{lstm_forward.1} parent=1 // pred_fallthru
      _
    %v23 = vld [vmem:[%s1] sm:$0xff]
    %v24 = vld [vmem:[%s1 + $0x8] sm:$0xff]
    %v25 = vld [vmem:[%s1 + $0x10] sm:$0xff]
    %v26 = vld [vmem:[%s1 + $0x18] sm:$0xff]
    %v27 = vld [vmem:[%s1 + $0x20] sm:$0xff]
    %v28 = vld [vmem:[%s1 + $0x28] sm:$0xff]
    %v29 = vld [vmem:[%s2] sm:$0x1]
    %v31 = vlaneseq
    %v32 = vshrl.u32 %v31, 7
    %v33 = vsub.s32 0, %v32
    %v34 = vrot.slane %v29, %v33
    %v36 = vld [vmem:[%s0] sm:$0xff]
    %vm37 = vcmask 130048
    %v38 = vsel %vm37, %v36, 0.0
    %vm39 = vcmask 392192
    %v41 = vsel %vm39, %v38, 0
    %43 = vmatprep.subr.mxu0 0.0
    %44 = vmatpush1.msra.mxu0 %v23
    %45 = vmatprep.subr.mxu0 0.0
    %46 = vmatpush1.msra.mxu0 %v24
    %47 = vmatprep.subr.mxu0 0.0
    %48 = vmatpush1.msra.mxu0 %v25
    %49 = vmatprep.subr.mxu0 0.0
    %50 = vmatpush1.msra.mxu0 %v26
    %51 = vmatprep.subr.mxu0 0.0
    %52 = vmatpush1.msra.mxu0 %v27
    %53 = vmatprep.subr.mxu0 0.0
    %54 = vmatpush1.msra.mxu0 %v28
    %55 = vmatprep.subr.mxu0 0.0
    %56 = vmatpush1.msra.mxu0 0.0
    %57 = vmatprep.subr.mxu0 0.0
    %58 = vmatpush1.msra.mxu0 0.0
    %59 = vmatprep.subr.mxu0 0.0
    %60 = vmatpush1.msra.mxu0 0.0
    %61 = vmatprep.subr.mxu0 0.0
    %62 = vmatpush1.msra.mxu0 0.0
    %63 = vmatprep.subr.mxu0 0.0
    %64 = vmatpush1.msra.mxu0 0.0
    %65 = vmatprep.subr.mxu0 0.0
    %66 = vmatpush1.msra.mxu0 0.0
    %67 = vmatprep.subr.mxu0 0.0
    %68 = vmatpush1.msra.mxu0 0.0
    %69 = vmatprep.subr.mxu0 0.0
    %70 = vmatpush1.msra.mxu0 0.0
    %71 = vmatprep.subr.mxu0 0.0
    %72 = vmatpush1.msra.mxu0 0.0
    %73 = vmatprep.subr.mxu0 0.0
    %74 = vmatpush1.msra.mxu0 0.0
    %75 = vmatprep.subr.mxu0 0.0
    %76 = vmatpush1.msra.mxu0 0.0
    %77 = vmatprep.subr.mxu0 0.0
    %78 = vmatpush1.msra.mxu0 0.0
    %79 = vmatprep.subr.mxu0 0.0
    %80 = vmatpush1.msra.mxu0 0.0
    %81 = vmatprep.subr.mxu0 0.0
    %82 = vmatpush1.msra.mxu0 0.0
    %83 = vmatprep.subr.mxu0 0.0
    %84 = vmatpush1.msra.mxu0 0.0
    %85 = vmatprep.subr.mxu0 0.0
    %86 = vmatpush1.msra.mxu0 0.0
    %87 = vmatprep.subr.mxu0 0.0
    %88 = vmatpush1.msra.mxu0 0.0
    %89 = vmatprep.subr.mxu0 0.0
    %90 = vmatpush1.msra.mxu0 0.0
    %91 = vmatprep.subr.mxu0 0.0
    %92 = vmatpush1.msra.mxu0 0.0
    %93 = vmatprep.subr.mxu0 0.0
    %94 = vmatpush1.msra.mxu0 0.0
    %95 = vmatprep.subr.mxu0 0.0
    %96 = vmatpush1.msra.mxu0 0.0
    %97 = vmatprep.subr.mxu0 0.0
    %98 = vmatpush1.msra.mxu0 0.0
    %99 = vmatprep.subr.mxu0 0.0
    %100 = vmatpush1.msra.mxu0 0.0
    %101 = vmatprep.subr.mxu0 0.0
    %102 = vmatpush1.msra.mxu0 0.0
    %103 = vmatprep.subr.mxu0 0.0
    %104 = vmatpush1.msra.mxu0 0.0
    %105 = vmatprep.subr.mxu0 0.0
    %106 = vmatpush1.msra.mxu0 0.0
    %107 = vmatprep.mubr.f32.mxu0 0.0
    %108 = vmatmul.mubr.f32.gmra.mrb[0].mxu0 %v41
    %v109 = vpop.f32.mrb[0].mxu0
    %v110 = vadd.f32 %v34, %v109
    %v111 = vpop.f32.mrb[0].mxu0
    %112 = vdwg.mxu0
    %v113 = vxor.u32 %v110, 2147483648
    %v114 = vmul.f32 %v113, 1.442695
    %v115 = vpow.pop %v114
    %v116 = vadd.f32 %v115, 1.0
    %v117 = vrcp.pop %v116
    %v118 = vmul.f32 1.0, %v117
    %v119 = vtanh.pop %v110
    %v120 = vmul.f32 %v118, 0.0
    %122 = vrot.lane.b32.xlu0 %v119, 64
    %v123 = vpop.permute.xlu0 %122
    %v125 = vmul.f32 %v118, %v123
    %127 = vrot.lane.b32.xlu0 %v125, 32
    %v128 = vpop.permute.xlu0 %127
    %v130 = vadd.f32 %v120, %v128
    %v131 = vtanh.pop %v130
    %133 = vrot.lane.b32.xlu0 %v131, 64
    %v134 = vpop.permute.xlu0 %133
    %v136 = vmul.f32 %v118, %v134
    %138 = vrot.lane.b32.xlu0 %v136, 32
    %v139 = vpop.permute.xlu0 %138
    %vm141 = vcmask 261120
    %142 = vst.msk [vmem:[%s5] sm:$0xff] %vm141, %v139
    %s143 = scalar_lea.vmem %s0, 8
    %v144 = vld [vmem:[%s143] sm:$0xff]
    %145 = vrot.lane.b32.xlu0 %v136, 48
    %v146 = vpop.permute.xlu0 %145
    %v148 = vsel %vm37, %v144, %v146
    %v150 = vsel %vm39, %v148, 0
    %152 = vmatprep.subr.mxu0 0.0
    %153 = vmatpush1.msra.mxu0 %v23
    %154 = vmatprep.subr.mxu0 0.0
    %155 = vmatpush1.msra.mxu0 %v24
    %156 = vmatprep.subr.mxu0 0.0
    %157 = vmatpush1.msra.mxu0 %v25
    %158 = vmatprep.subr.mxu0 0.0
    %159 = vmatpush1.msra.mxu0 %v26
    %160 = vmatprep.subr.mxu0 0.0
    %161 = vmatpush1.msra.mxu0 %v27
    %162 = vmatprep.subr.mxu0 0.0
    %163 = vmatpush1.msra.mxu0 %v28
    %164 = vmatprep.subr.mxu0 0.0
    %165 = vmatpush1.msra.mxu0 0.0
    %166 = vmatprep.subr.mxu0 0.0
    %167 = vmatpush1.msra.mxu0 0.0
    %168 = vmatprep.subr.mxu0 0.0
    %169 = vmatpush1.msra.mxu0 0.0
    %170 = vmatprep.subr.mxu0 0.0
    %171 = vmatpush1.msra.mxu0 0.0
    %172 = vmatprep.subr.mxu0 0.0
    %173 = vmatpush1.msra.mxu0 0.0
    %174 = vmatprep.subr.mxu0 0.0
    %175 = vmatpush1.msra.mxu0 0.0
    %176 = vmatprep.subr.mxu0 0.0
    %177 = vmatpush1.msra.mxu0 0.0
    %178 = vmatprep.subr.mxu0 0.0
    %179 = vmatpush1.msra.mxu0 0.0
    %180 = vmatprep.subr.mxu0 0.0
    %181 = vmatpush1.msra.mxu0 0.0
    %182 = vmatprep.subr.mxu0 0.0
    %183 = vmatpush1.msra.mxu0 0.0
    %184 = vmatprep.subr.mxu0 0.0
    %185 = vmatpush1.msra.mxu0 0.0
    %186 = vmatprep.subr.mxu0 0.0
    %187 = vmatpush1.msra.mxu0 0.0
    %188 = vmatprep.subr.mxu0 0.0
    %189 = vmatpush1.msra.mxu0 0.0
    %190 = vmatprep.subr.mxu0 0.0
    %191 = vmatpush1.msra.mxu0 0.0
    %192 = vmatprep.subr.mxu0 0.0
    %193 = vmatpush1.msra.mxu0 0.0
    %194 = vmatprep.subr.mxu0 0.0
    %195 = vmatpush1.msra.mxu0 0.0
    %196 = vmatprep.subr.mxu0 0.0
    %197 = vmatpush1.msra.mxu0 0.0
    %198 = vmatprep.subr.mxu0 0.0
    %199 = vmatpush1.msra.mxu0 0.0
    %200 = vmatprep.subr.mxu0 0.0
    %201 = vmatpush1.msra.mxu0 0.0
    %202 = vmatprep.subr.mxu0 0.0
    %203 = vmatpush1.msra.mxu0 0.0
    %204 = vmatprep.subr.mxu0 0.0
    %205 = vmatpush1.msra.mxu0 0.0
    %206 = vmatprep.subr.mxu0 0.0
    %207 = vmatpush1.msra.mxu0 0.0
    %208 = vmatprep.subr.mxu0 0.0
    %209 = vmatpush1.msra.mxu0 0.0
    %210 = vmatprep.subr.mxu0 0.0
    %211 = vmatpush1.msra.mxu0 0.0
    %212 = vmatprep.subr.mxu0 0.0
    %213 = vmatpush1.msra.mxu0 0.0
    %214 = vmatprep.subr.mxu0 0.0
    %215 = vmatpush1.msra.mxu0 0.0
    %216 = vmatprep.mubr.f32.mxu0 0.0
    %217 = vmatmul.mubr.f32.gmra.mrb[0].mxu0 %v150
    %v218 = vpop.f32.mrb[0].mxu0
    %v219 = vadd.f32 %v34, %v218
    %v220 = vpop.f32.mrb[0].mxu0
    %221 = vdwg.mxu0
    %v222 = vxor.u32 %v219, 2147483648
    %v223 = vmul.f32 %v222, 1.442695
    %v224 = vpow.pop %v223
    %v225 = vadd.f32 %v224, 1.0
    %v226 = vrcp.pop %v225
    %v227 = vmul.f32 1.0, %v226
    %v228 = vtanh.pop %v219
    %v229 = vmul.f32 %v227, %v130
    %231 = vrot.lane.b32.xlu0 %v228, 64
    %v232 = vpop.permute.xlu0 %231
    %v234 = vmul.f32 %v227, %v232
    %236 = vrot.lane.b32.xlu0 %v234, 32
    %v237 = vpop.permute.xlu0 %236
    %v239 = vadd.f32 %v229, %v237
    %v240 = vtanh.pop %v239
    %242 = vrot.lane.b32.xlu0 %v240, 64
    %v243 = vpop.permute.xlu0 %242
    %v245 = vmul.f32 %v227, %v243
    %247 = vrot.lane.b32.xlu0 %v245, 32
    %v248 = vpop.permute.xlu0 %247
    %s250 = scalar_lea.vmem %s5, 8
    %251 = vst.msk [vmem:[%s250] sm:$0xff] %vm141, %v248
    %s252 = scalar_lea.vmem %s0, 16
    %v253 = vld [vmem:[%s252] sm:$0xff]
    %254 = vrot.lane.b32.xlu0 %v245, 48
    %v255 = vpop.permute.xlu0 %254
    %v257 = vsel %vm37, %v253, %v255
    %v259 = vsel %vm39, %v257, 0
    %261 = vmatprep.subr.mxu0 0.0
    %262 = vmatpush1.msra.mxu0 %v23
    %263 = vmatprep.subr.mxu0 0.0
    %264 = vmatpush1.msra.mxu0 %v24
    %265 = vmatprep.subr.mxu0 0.0
    %266 = vmatpush1.msra.mxu0 %v25
    %267 = vmatprep.subr.mxu0 0.0
    %268 = vmatpush1.msra.mxu0 %v26
    %269 = vmatprep.subr.mxu0 0.0
    %270 = vmatpush1.msra.mxu0 %v27
    %271 = vmatprep.subr.mxu0 0.0
    %272 = vmatpush1.msra.mxu0 %v28
    %273 = vmatprep.subr.mxu0 0.0
    %274 = vmatpush1.msra.mxu0 0.0
    %275 = vmatprep.subr.mxu0 0.0
    %276 = vmatpush1.msra.mxu0 0.0
    %277 = vmatprep.subr.mxu0 0.0
    %278 = vmatpush1.msra.mxu0 0.0
    %279 = vmatprep.subr.mxu0 0.0
    %280 = vmatpush1.msra.mxu0 0.0
    %281 = vmatprep.subr.mxu0 0.0
    %282 = vmatpush1.msra.mxu0 0.0
    %283 = vmatprep.subr.mxu0 0.0
    %284 = vmatpush1.msra.mxu0 0.0
    %285 = vmatprep.subr.mxu0 0.0
    %286 = vmatpush1.msra.mxu0 0.0
    %287 = vmatprep.subr.mxu0 0.0
    %288 = vmatpush1.msra.mxu0 0.0
    %289 = vmatprep.subr.mxu0 0.0
    %290 = vmatpush1.msra.mxu0 0.0
    %291 = vmatprep.subr.mxu0 0.0
    %292 = vmatpush1.msra.mxu0 0.0
    %293 = vmatprep.subr.mxu0 0.0
    %294 = vmatpush1.msra.mxu0 0.0
    %295 = vmatprep.subr.mxu0 0.0
    %296 = vmatpush1.msra.mxu0 0.0
    %297 = vmatprep.subr.mxu0 0.0
    %298 = vmatpush1.msra.mxu0 0.0
    %299 = vmatprep.subr.mxu0 0.0
    %300 = vmatpush1.msra.mxu0 0.0
    %301 = vmatprep.subr.mxu0 0.0
    %302 = vmatpush1.msra.mxu0 0.0
    %303 = vmatprep.subr.mxu0 0.0
    %304 = vmatpush1.msra.mxu0 0.0
    %305 = vmatprep.subr.mxu0 0.0
    %306 = vmatpush1.msra.mxu0 0.0
    %307 = vmatprep.subr.mxu0 0.0
    %308 = vmatpush1.msra.mxu0 0.0
    %309 = vmatprep.subr.mxu0 0.0
    %310 = vmatpush1.msra.mxu0 0.0
    %311 = vmatprep.subr.mxu0 0.0
    %312 = vmatpush1.msra.mxu0 0.0
    %313 = vmatprep.subr.mxu0 0.0
    %314 = vmatpush1.msra.mxu0 0.0
    %315 = vmatprep.subr.mxu0 0.0
    %316 = vmatpush1.msra.mxu0 0.0
    %317 = vmatprep.subr.mxu0 0.0
    %318 = vmatpush1.msra.mxu0 0.0
    %319 = vmatprep.subr.mxu0 0.0
    %320 = vmatpush1.msra.mxu0 0.0
    %321 = vmatprep.subr.mxu0 0.0
    %322 = vmatpush1.msra.mxu0 0.0
    %323 = vmatprep.subr.mxu0 0.0
    %324 = vmatpush1.msra.mxu0 0.0
    %325 = vmatprep.mubr.f32.mxu0 0.0
    %326 = vmatmul.mubr.f32.gmra.mrb[0].mxu0 %v259
    %v327 = vpop.f32.mrb[0].mxu0
    %v328 = vadd.f32 %v34, %v327
    %v329 = vpop.f32.mrb[0].mxu0
    %330 = vdwg.mxu0
    %v331 = vxor.u32 %v328, 2147483648
    %v332 = vmul.f32 %v331, 1.442695
    %v333 = vpow.pop %v332
    %v334 = vadd.f32 %v333, 1.0
    %v335 = vrcp.pop %v334
    %v336 = vmul.f32 1.0, %v335
    %v337 = vtanh.pop %v328
    %v338 = vmul.f32 %v336, %v239
    %340 = vrot.lane.b32.xlu0 %v337, 64
    %v341 = vpop.permute.xlu0 %340
    %v343 = vmul.f32 %v336, %v341
    %345 = vrot.lane.b32.xlu0 %v343, 32
    %v346 = vpop.permute.xlu0 %345
    %v348 = vadd.f32 %v338, %v346
    %v349 = vtanh.pop %v348
    %351 = vrot.lane.b32.xlu0 %v349, 64
    %v352 = vpop.permute.xlu0 %351
    %v354 = vmul.f32 %v336, %v352
    %356 = vrot.lane.b32.xlu0 %v354, 32
    %v357 = vpop.permute.xlu0 %356
    %s359 = scalar_lea.vmem %s5, 16
    %360 = vst.msk [vmem:[%s359] sm:$0xff] %vm141, %v357
    %s361 = scalar_lea.vmem %s0, 24
    %v362 = vld [vmem:[%s361] sm:$0xff]
    %363 = vrot.lane.b32.xlu0 %v354, 48
    %v364 = vpop.permute.xlu0 %363
    %v366 = vsel %vm37, %v362, %v364
    %v368 = vsel %vm39, %v366, 0
    %370 = vmatprep.subr.mxu0 0.0
    %371 = vmatpush1.msra.mxu0 %v23
    %372 = vmatprep.subr.mxu0 0.0
    %373 = vmatpush1.msra.mxu0 %v24
    %374 = vmatprep.subr.mxu0 0.0
    %375 = vmatpush1.msra.mxu0 %v25
    %376 = vmatprep.subr.mxu0 0.0
    %377 = vmatpush1.msra.mxu0 %v26
    %378 = vmatprep.subr.mxu0 0.0
    %379 = vmatpush1.msra.mxu0 %v27
    %380 = vmatprep.subr.mxu0 0.0
    %381 = vmatpush1.msra.mxu0 %v28
    %382 = vmatprep.subr.mxu0 0.0
    %383 = vmatpush1.msra.mxu0 0.0
    %384 = vmatprep.subr.mxu0 0.0
    %385 = vmatpush1.msra.mxu0 0.0
    %386 = vmatprep.subr.mxu0 0.0
    %387 = vmatpush1.msra.mxu0 0.0
    %388 = vmatprep.subr.mxu0 0.0
    %389 = vmatpush1.msra.mxu0 0.0
    %390 = vmatprep.subr.mxu0 0.0
    %391 = vmatpush1.msra.mxu0 0.0
    %392 = vmatprep.subr.mxu0 0.0
    %393 = vmatpush1.msra.mxu0 0.0
    %394 = vmatprep.subr.mxu0 0.0
    %395 = vmatpush1.msra.mxu0 0.0
    %396 = vmatprep.subr.mxu0 0.0
    %397 = vmatpush1.msra.mxu0 0.0
    %398 = vmatprep.subr.mxu0 0.0
    %399 = vmatpush1.msra.mxu0 0.0
    %400 = vmatprep.subr.mxu0 0.0
    %401 = vmatpush1.msra.mxu0 0.0
    %402 = vmatprep.subr.mxu0 0.0
    %403 = vmatpush1.msra.mxu0 0.0
    %404 = vmatprep.subr.mxu0 0.0
    %405 = vmatpush1.msra.mxu0 0.0
    %406 = vmatprep.subr.mxu0 0.0
    %407 = vmatpush1.msra.mxu0 0.0
    %408 = vmatprep.subr.mxu0 0.0
    %409 = vmatpush1.msra.mxu0 0.0
    %410 = vmatprep.subr.mxu0 0.0
    %411 = vmatpush1.msra.mxu0 0.0
    %412 = vmatprep.subr.mxu0 0.0
    %413 = vmatpush1.msra.mxu0 0.0
    %414 = vmatprep.subr.mxu0 0.0
    %415 = vmatpush1.msra.mxu0 0.0
    %416 = vmatprep.subr.mxu0 0.0
    %417 = vmatpush1.msra.mxu0 0.0
    %418 = vmatprep.subr.mxu0 0.0
    %419 = vmatpush1.msra.mxu0 0.0
    %420 = vmatprep.subr.mxu0 0.0
    %421 = vmatpush1.msra.mxu0 0.0
    %422 = vmatprep.subr.mxu0 0.0
    %423 = vmatpush1.msra.mxu0 0.0
    %424 = vmatprep.subr.mxu0 0.0
    %425 = vmatpush1.msra.mxu0 0.0
    %426 = vmatprep.subr.mxu0 0.0
    %427 = vmatpush1.msra.mxu0 0.0
    %428 = vmatprep.subr.mxu0 0.0
    %429 = vmatpush1.msra.mxu0 0.0
    %430 = vmatprep.subr.mxu0 0.0
    %431 = vmatpush1.msra.mxu0 0.0
    %432 = vmatprep.subr.mxu0 0.0
    %433 = vmatpush1.msra.mxu0 0.0
    %434 = vmatprep.mubr.f32.mxu0 0.0
    %435 = vmatmul.mubr.f32.gmra.mrb[0].mxu0 %v368
    %v436 = vpop.f32.mrb[0].mxu0
    %v437 = vadd.f32 %v34, %v436
    %v438 = vpop.f32.mrb[0].mxu0
    %439 = vdwg.mxu0
    %v440 = vxor.u32 %v437, 2147483648
    %v441 = vmul.f32 %v440, 1.442695
    %v442 = vpow.pop %v441
    %v443 = vadd.f32 %v442, 1.0
    %v444 = vrcp.pop %v443
    %v445 = vmul.f32 1.0, %v444
    %v446 = vtanh.pop %v437
    %v447 = vmul.f32 %v445, %v348
    %449 = vrot.lane.b32.xlu0 %v446, 64
    %v450 = vpop.permute.xlu0 %449
    %v452 = vmul.f32 %v445, %v450
    %454 = vrot.lane.b32.xlu0 %v452, 32
    %v455 = vpop.permute.xlu0 %454
    %v457 = vadd.f32 %v447, %v455
    %v458 = vtanh.pop %v457
    %460 = vrot.lane.b32.xlu0 %v458, 64
    %v461 = vpop.permute.xlu0 %460
    %v463 = vmul.f32 %v445, %v461
    %465 = vrot.lane.b32.xlu0 %v463, 32
    %v466 = vpop.permute.xlu0 %465
    %s468 = scalar_lea.vmem %s5, 24
    %469 = vst.msk [vmem:[%s468] sm:$0xff] %vm141, %v466
    %s470 = scalar_lea.vmem %s0, 32
    %v471 = vld [vmem:[%s470] sm:$0xff]
    %472 = vrot.lane.b32.xlu0 %v463, 48
    %v473 = vpop.permute.xlu0 %472
    %v475 = vsel %vm37, %v471, %v473
    %v477 = vsel %vm39, %v475, 0
    %479 = vmatprep.subr.mxu0 0.0
    %480 = vmatpush1.msra.mxu0 %v23
    %481 = vmatprep.subr.mxu0 0.0
    %482 = vmatpush1.msra.mxu0 %v24
    %483 = vmatprep.subr.mxu0 0.0
    %484 = vmatpush1.msra.mxu0 %v25
    %485 = vmatprep.subr.mxu0 0.0
    %486 = vmatpush1.msra.mxu0 %v26
    %487 = vmatprep.subr.mxu0 0.0
    %488 = vmatpush1.msra.mxu0 %v27
    %489 = vmatprep.subr.mxu0 0.0
    %490 = vmatpush1.msra.mxu0 %v28
    %491 = vmatprep.subr.mxu0 0.0
    %492 = vmatpush1.msra.mxu0 0.0
    %493 = vmatprep.subr.mxu0 0.0
    %494 = vmatpush1.msra.mxu0 0.0
    %495 = vmatprep.subr.mxu0 0.0
    %496 = vmatpush1.msra.mxu0 0.0
    %497 = vmatprep.subr.mxu0 0.0
    %498 = vmatpush1.msra.mxu0 0.0
    %499 = vmatprep.subr.mxu0 0.0
    %500 = vmatpush1.msra.mxu0 0.0
    %501 = vmatprep.subr.mxu0 0.0
    %502 = vmatpush1.msra.mxu0 0.0
    %503 = vmatprep.subr.mxu0 0.0
    %504 = vmatpush1.msra.mxu0 0.0
    %505 = vmatprep.subr.mxu0 0.0
    %506 = vmatpush1.msra.mxu0 0.0
    %507 = vmatprep.subr.mxu0 0.0
    %508 = vmatpush1.msra.mxu0 0.0
    %509 = vmatprep.subr.mxu0 0.0
    %510 = vmatpush1.msra.mxu0 0.0
    %511 = vmatprep.subr.mxu0 0.0
    %512 = vmatpush1.msra.mxu0 0.0
    %513 = vmatprep.subr.mxu0 0.0
    %514 = vmatpush1.msra.mxu0 0.0
    %515 = vmatprep.subr.mxu0 0.0
    %516 = vmatpush1.msra.mxu0 0.0
    %517 = vmatprep.subr.mxu0 0.0
    %518 = vmatpush1.msra.mxu0 0.0
    %519 = vmatprep.subr.mxu0 0.0
    %520 = vmatpush1.msra.mxu0 0.0
    %521 = vmatprep.subr.mxu0 0.0
    %522 = vmatpush1.msra.mxu0 0.0
    %523 = vmatprep.subr.mxu0 0.0
    %524 = vmatpush1.msra.mxu0 0.0
    %525 = vmatprep.subr.mxu0 0.0
    %526 = vmatpush1.msra.mxu0 0.0
    %527 = vmatprep.subr.mxu0 0.0
    %528 = vmatpush1.msra.mxu0 0.0
    %529 = vmatprep.subr.mxu0 0.0
    %530 = vmatpush1.msra.mxu0 0.0
    %531 = vmatprep.subr.mxu0 0.0
    %532 = vmatpush1.msra.mxu0 0.0
    %533 = vmatprep.subr.mxu0 0.0
    %534 = vmatpush1.msra.mxu0 0.0
    %535 = vmatprep.subr.mxu0 0.0
    %536 = vmatpush1.msra.mxu0 0.0
    %537 = vmatprep.subr.mxu0 0.0
    %538 = vmatpush1.msra.mxu0 0.0
    %539 = vmatprep.subr.mxu0 0.0
    %540 = vmatpush1.msra.mxu0 0.0
    %541 = vmatprep.subr.mxu0 0.0
    %542 = vmatpush1.msra.mxu0 0.0
    %543 = vmatprep.mubr.f32.mxu0 0.0
    %544 = vmatmul.mubr.f32.gmra.mrb[0].mxu0 %v477
    %v545 = vpop.f32.mrb[0].mxu0
    %v546 = vadd.f32 %v34, %v545
    %v547 = vpop.f32.mrb[0].mxu0
    %548 = vdwg.mxu0
    %v549 = vxor.u32 %v546, 2147483648
    %v550 = vmul.f32 %v549, 1.442695
    %v551 = vpow.pop %v550
    %v552 = vadd.f32 %v551, 1.0
    %v553 = vrcp.pop %v552
    %v554 = vmul.f32 1.0, %v553
    %v555 = vtanh.pop %v546
    %v556 = vmul.f32 %v554, %v457
    %558 = vrot.lane.b32.xlu0 %v555, 64
    %v559 = vpop.permute.xlu0 %558
    %v561 = vmul.f32 %v554, %v559
    %563 = vrot.lane.b32.xlu0 %v561, 32
    %v564 = vpop.permute.xlu0 %563
    %v566 = vadd.f32 %v556, %v564
    %v567 = vtanh.pop %v566
    %569 = vrot.lane.b32.xlu0 %v567, 64
    %v570 = vpop.permute.xlu0 %569
    %v572 = vmul.f32 %v554, %v570
    %574 = vrot.lane.b32.xlu0 %v572, 32
    %v575 = vpop.permute.xlu0 %574
    %s577 = scalar_lea.vmem %s5, 32
    %578 = vst.msk [vmem:[%s577] sm:$0xff] %vm141, %v575
    %s579 = scalar_lea.vmem %s0, 40
    %v580 = vld [vmem:[%s579] sm:$0xff]
    %581 = vrot.lane.b32.xlu0 %v572, 48
    %v582 = vpop.permute.xlu0 %581
    %v584 = vsel %vm37, %v580, %v582
    %v586 = vsel %vm39, %v584, 0
    %588 = vmatprep.subr.mxu0 0.0
    %589 = vmatpush1.msra.mxu0 %v23
    %590 = vmatprep.subr.mxu0 0.0
    %591 = vmatpush1.msra.mxu0 %v24
    %592 = vmatprep.subr.mxu0 0.0
    %593 = vmatpush1.msra.mxu0 %v25
    %594 = vmatprep.subr.mxu0 0.0
    %595 = vmatpush1.msra.mxu0 %v26
    %596 = vmatprep.subr.mxu0 0.0
    %597 = vmatpush1.msra.mxu0 %v27
    %598 = vmatprep.subr.mxu0 0.0
    %599 = vmatpush1.msra.mxu0 %v28
    %600 = vmatprep.subr.mxu0 0.0
    %601 = vmatpush1.msra.mxu0 0.0
    %602 = vmatprep.subr.mxu0 0.0
    %603 = vmatpush1.msra.mxu0 0.0
    %604 = vmatprep.subr.mxu0 0.0
    %605 = vmatpush1.msra.mxu0 0.0
    %606 = vmatprep.subr.mxu0 0.0
    %607 = vmatpush1.msra.mxu0 0.0
    %608 = vmatprep.subr.mxu0 0.0
    %609 = vmatpush1.msra.mxu0 0.0
    %610 = vmatprep.subr.mxu0 0.0
    %611 = vmatpush1.msra.mxu0 0.0
    %612 = vmatprep.subr.mxu0 0.0
    %613 = vmatpush1.msra.mxu0 0.0
    %614 = vmatprep.subr.mxu0 0.0
    %615 = vmatpush1.msra.mxu0 0.0
    %616 = vmatprep.subr.mxu0 0.0
    %617 = vmatpush1.msra.mxu0 0.0
    %618 = vmatprep.subr.mxu0 0.0
    %619 = vmatpush1.msra.mxu0 0.0
    %620 = vmatprep.subr.mxu0 0.0
    %621 = vmatpush1.msra.mxu0 0.0
    %622 = vmatprep.subr.mxu0 0.0
    %623 = vmatpush1.msra.mxu0 0.0
    %624 = vmatprep.subr.mxu0 0.0
    %625 = vmatpush1.msra.mxu0 0.0
    %626 = vmatprep.subr.mxu0 0.0
    %627 = vmatpush1.msra.mxu0 0.0
    %628 = vmatprep.subr.mxu0 0.0
    %629 = vmatpush1.msra.mxu0 0.0
    %630 = vmatprep.subr.mxu0 0.0
    %631 = vmatpush1.msra.mxu0 0.0
    %632 = vmatprep.subr.mxu0 0.0
    %633 = vmatpush1.msra.mxu0 0.0
    %634 = vmatprep.subr.mxu0 0.0
    %635 = vmatpush1.msra.mxu0 0.0
    %636 = vmatprep.subr.mxu0 0.0
    %637 = vmatpush1.msra.mxu0 0.0
    %638 = vmatprep.subr.mxu0 0.0
    %639 = vmatpush1.msra.mxu0 0.0
    %640 = vmatprep.subr.mxu0 0.0
    %641 = vmatpush1.msra.mxu0 0.0
    %642 = vmatprep.subr.mxu0 0.0
    %643 = vmatpush1.msra.mxu0 0.0
    %644 = vmatprep.subr.mxu0 0.0
    %645 = vmatpush1.msra.mxu0 0.0
    %646 = vmatprep.subr.mxu0 0.0
    %647 = vmatpush1.msra.mxu0 0.0
    %648 = vmatprep.subr.mxu0 0.0
    %649 = vmatpush1.msra.mxu0 0.0
    %650 = vmatprep.subr.mxu0 0.0
    %651 = vmatpush1.msra.mxu0 0.0
    %652 = vmatprep.mubr.f32.mxu0 0.0
    %653 = vmatmul.mubr.f32.gmra.mrb[0].mxu0 %v586
    %v654 = vpop.f32.mrb[0].mxu0
    %v655 = vadd.f32 %v34, %v654
    %v656 = vpop.f32.mrb[0].mxu0
    %657 = vdwg.mxu0
    %v658 = vxor.u32 %v655, 2147483648
    %v659 = vmul.f32 %v658, 1.442695
    %v660 = vpow.pop %v659
    %v661 = vadd.f32 %v660, 1.0
    %v662 = vrcp.pop %v661
    %v663 = vmul.f32 1.0, %v662
    %v664 = vtanh.pop %v655
    %v665 = vmul.f32 %v663, %v566
    %667 = vrot.lane.b32.xlu0 %v664, 64
    %v668 = vpop.permute.xlu0 %667
    %v670 = vmul.f32 %v663, %v668
    %672 = vrot.lane.b32.xlu0 %v670, 32
    %v673 = vpop.permute.xlu0 %672
    %v675 = vadd.f32 %v665, %v673
    %v676 = vtanh.pop %v675
    %678 = vrot.lane.b32.xlu0 %v676, 64
    %v679 = vpop.permute.xlu0 %678
    %v681 = vmul.f32 %v663, %v679
    %683 = vrot.lane.b32.xlu0 %v681, 32
    %v684 = vpop.permute.xlu0 %683
    %s686 = scalar_lea.vmem %s5, 40
    %687 = vst.msk [vmem:[%s686] sm:$0xff] %vm141, %v684
    %s688 = scalar_lea.vmem %s0, 48
    %v689 = vld [vmem:[%s688] sm:$0xff]
    %690 = vrot.lane.b32.xlu0 %v681, 48
    %v691 = vpop.permute.xlu0 %690
    %v693 = vsel %vm37, %v689, %v691
    %v695 = vsel %vm39, %v693, 0
    %697 = vmatprep.subr.mxu0 0.0
    %698 = vmatpush1.msra.mxu0 %v23
    %699 = vmatprep.subr.mxu0 0.0
    %700 = vmatpush1.msra.mxu0 %v24
    %701 = vmatprep.subr.mxu0 0.0
    %702 = vmatpush1.msra.mxu0 %v25
    %703 = vmatprep.subr.mxu0 0.0
    %704 = vmatpush1.msra.mxu0 %v26
    %705 = vmatprep.subr.mxu0 0.0
    %706 = vmatpush1.msra.mxu0 %v27
    %707 = vmatprep.subr.mxu0 0.0
    %708 = vmatpush1.msra.mxu0 %v28
    %709 = vmatprep.subr.mxu0 0.0
    %710 = vmatpush1.msra.mxu0 0.0
    %711 = vmatprep.subr.mxu0 0.0
    %712 = vmatpush1.msra.mxu0 0.0
    %713 = vmatprep.subr.mxu0 0.0
    %714 = vmatpush1.msra.mxu0 0.0
    %715 = vmatprep.subr.mxu0 0.0
    %716 = vmatpush1.msra.mxu0 0.0
    %717 = vmatprep.subr.mxu0 0.0
    %718 = vmatpush1.msra.mxu0 0.0
    %719 = vmatprep.subr.mxu0 0.0
    %720 = vmatpush1.msra.mxu0 0.0
    %721 = vmatprep.subr.mxu0 0.0
    %722 = vmatpush1.msra.mxu0 0.0
    %723 = vmatprep.subr.mxu0 0.0
    %724 = vmatpush1.msra.mxu0 0.0
    %725 = vmatprep.subr.mxu0 0.0
    %726 = vmatpush1.msra.mxu0 0.0
    %727 = vmatprep.subr.mxu0 0.0
    %728 = vmatpush1.msra.mxu0 0.0
    %729 = vmatprep.subr.mxu0 0.0
    %730 = vmatpush1.msra.mxu0 0.0
    %731 = vmatprep.subr.mxu0 0.0
    %732 = vmatpush1.msra.mxu0 0.0
    %733 = vmatprep.subr.mxu0 0.0
    %734 = vmatpush1.msra.mxu0 0.0
    %735 = vmatprep.subr.mxu0 0.0
    %736 = vmatpush1.msra.mxu0 0.0
    %737 = vmatprep.subr.mxu0 0.0
    %738 = vmatpush1.msra.mxu0 0.0
    %739 = vmatprep.subr.mxu0 0.0
    %740 = vmatpush1.msra.mxu0 0.0
    %741 = vmatprep.subr.mxu0 0.0
    %742 = vmatpush1.msra.mxu0 0.0
    %743 = vmatprep.subr.mxu0 0.0
    %744 = vmatpush1.msra.mxu0 0.0
    %745 = vmatprep.subr.mxu0 0.0
    %746 = vmatpush1.msra.mxu0 0.0
    %747 = vmatprep.subr.mxu0 0.0
    %748 = vmatpush1.msra.mxu0 0.0
    %749 = vmatprep.subr.mxu0 0.0
    %750 = vmatpush1.msra.mxu0 0.0
    %751 = vmatprep.subr.mxu0 0.0
    %752 = vmatpush1.msra.mxu0 0.0
    %753 = vmatprep.subr.mxu0 0.0
    %754 = vmatpush1.msra.mxu0 0.0
    %755 = vmatprep.subr.mxu0 0.0
    %756 = vmatpush1.msra.mxu0 0.0
    %757 = vmatprep.subr.mxu0 0.0
    %758 = vmatpush1.msra.mxu0 0.0
    %759 = vmatprep.subr.mxu0 0.0
    %760 = vmatpush1.msra.mxu0 0.0
    %761 = vmatprep.mubr.f32.mxu0 0.0
    %762 = vmatmul.mubr.f32.gmra.mrb[0].mxu0 %v695
    %v763 = vpop.f32.mrb[0].mxu0
    %v764 = vadd.f32 %v34, %v763
    %v765 = vpop.f32.mrb[0].mxu0
    %766 = vdwg.mxu0
    %v767 = vxor.u32 %v764, 2147483648
    %v768 = vmul.f32 %v767, 1.442695
    %v769 = vpow.pop %v768
    %v770 = vadd.f32 %v769, 1.0
    %v771 = vrcp.pop %v770
    %v772 = vmul.f32 1.0, %v771
    %v773 = vtanh.pop %v764
    %v774 = vmul.f32 %v772, %v675
    %776 = vrot.lane.b32.xlu0 %v773, 64
    %v777 = vpop.permute.xlu0 %776
    %v779 = vmul.f32 %v772, %v777
    %781 = vrot.lane.b32.xlu0 %v779, 32
    %v782 = vpop.permute.xlu0 %781
    %v784 = vadd.f32 %v774, %v782
    %v785 = vtanh.pop %v784
    %787 = vrot.lane.b32.xlu0 %v785, 64
    %v788 = vpop.permute.xlu0 %787
    %v790 = vmul.f32 %v772, %v788
    %792 = vrot.lane.b32.xlu0 %v790, 32
    %v793 = vpop.permute.xlu0 %792
    %s795 = scalar_lea.vmem %s5, 48
    %796 = vst.msk [vmem:[%s795] sm:$0xff] %vm141, %v793
    %s797 = scalar_lea.vmem %s0, 56
    %v798 = vld [vmem:[%s797] sm:$0xff]
    %799 = vrot.lane.b32.xlu0 %v790, 48
    %v800 = vpop.permute.xlu0 %799
    %v802 = vsel %vm37, %v798, %v800
    %v804 = vsel %vm39, %v802, 0
    %806 = vmatprep.subr.mxu0 0.0
    %807 = vmatpush1.msra.mxu0 %v23
    %808 = vmatprep.subr.mxu0 0.0
    %809 = vmatpush1.msra.mxu0 %v24
    %810 = vmatprep.subr.mxu0 0.0
    %811 = vmatpush1.msra.mxu0 %v25
    %812 = vmatprep.subr.mxu0 0.0
    %813 = vmatpush1.msra.mxu0 %v26
    %814 = vmatprep.subr.mxu0 0.0
    %815 = vmatpush1.msra.mxu0 %v27
    %816 = vmatprep.subr.mxu0 0.0
    %817 = vmatpush1.msra.mxu0 %v28
    %818 = vmatprep.subr.mxu0 0.0
    %819 = vmatpush1.msra.mxu0 0.0
    %820 = vmatprep.subr.mxu0 0.0
    %821 = vmatpush1.msra.mxu0 0.0
    %822 = vmatprep.subr.mxu0 0.0
    %823 = vmatpush1.msra.mxu0 0.0
    %824 = vmatprep.subr.mxu0 0.0
    %825 = vmatpush1.msra.mxu0 0.0
    %826 = vmatprep.subr.mxu0 0.0
    %827 = vmatpush1.msra.mxu0 0.0
    %828 = vmatprep.subr.mxu0 0.0
    %829 = vmatpush1.msra.mxu0 0.0
    %830 = vmatprep.subr.mxu0 0.0
    %831 = vmatpush1.msra.mxu0 0.0
    %832 = vmatprep.subr.mxu0 0.0
    %833 = vmatpush1.msra.mxu0 0.0
    %834 = vmatprep.subr.mxu0 0.0
    %835 = vmatpush1.msra.mxu0 0.0
    %836 = vmatprep.subr.mxu0 0.0
    %837 = vmatpush1.msra.mxu0 0.0
    %838 = vmatprep.subr.mxu0 0.0
    %839 = vmatpush1.msra.mxu0 0.0
    %840 = vmatprep.subr.mxu0 0.0
    %841 = vmatpush1.msra.mxu0 0.0
    %842 = vmatprep.subr.mxu0 0.0
    %843 = vmatpush1.msra.mxu0 0.0
    %844 = vmatprep.subr.mxu0 0.0
    %845 = vmatpush1.msra.mxu0 0.0
    %846 = vmatprep.subr.mxu0 0.0
    %847 = vmatpush1.msra.mxu0 0.0
    %848 = vmatprep.subr.mxu0 0.0
    %849 = vmatpush1.msra.mxu0 0.0
    %850 = vmatprep.subr.mxu0 0.0
    %851 = vmatpush1.msra.mxu0 0.0
    %852 = vmatprep.subr.mxu0 0.0
    %853 = vmatpush1.msra.mxu0 0.0
    %854 = vmatprep.subr.mxu0 0.0
    %855 = vmatpush1.msra.mxu0 0.0
    %856 = vmatprep.subr.mxu0 0.0
    %857 = vmatpush1.msra.mxu0 0.0
    %858 = vmatprep.subr.mxu0 0.0
    %859 = vmatpush1.msra.mxu0 0.0
    %860 = vmatprep.subr.mxu0 0.0
    %861 = vmatpush1.msra.mxu0 0.0
    %862 = vmatprep.subr.mxu0 0.0
    %863 = vmatpush1.msra.mxu0 0.0
    %864 = vmatprep.subr.mxu0 0.0
    %865 = vmatpush1.msra.mxu0 0.0
    %866 = vmatprep.subr.mxu0 0.0
    %867 = vmatpush1.msra.mxu0 0.0
    %868 = vmatprep.subr.mxu0 0.0
    %869 = vmatpush1.msra.mxu0 0.0
    %870 = vmatprep.mubr.f32.mxu0 0.0
    %871 = vmatmul.mubr.f32.gmra.mrb[0].mxu0 %v804
    %v872 = vpop.f32.mrb[0].mxu0
    %v873 = vadd.f32 %v34, %v872
    %v874 = vpop.f32.mrb[0].mxu0
    %875 = vdwg.mxu0
    %v876 = vxor.u32 %v873, 2147483648
    %v877 = vmul.f32 %v876, 1.442695
    %v878 = vpow.pop %v877
    %v879 = vadd.f32 %v878, 1.0
    %v880 = vrcp.pop %v879
    %v881 = vmul.f32 1.0, %v880
    %v882 = vtanh.pop %v873
    %v883 = vmul.f32 %v881, %v784
    %885 = vrot.lane.b32.xlu0 %v882, 64
    %v886 = vpop.permute.xlu0 %885
    %v888 = vmul.f32 %v881, %v886
    %890 = vrot.lane.b32.xlu0 %v888, 32
    %v891 = vpop.permute.xlu0 %890
    %v893 = vadd.f32 %v883, %v891
    %v894 = vtanh.pop %v893
    %896 = vrot.lane.b32.xlu0 %v894, 64
    %v897 = vpop.permute.xlu0 %896
    %v899 = vmul.f32 %v881, %v897
    %901 = vrot.lane.b32.xlu0 %v899, 32
    %v902 = vpop.permute.xlu0 %901
    %s904 = scalar_lea.vmem %s5, 56
    %905 = vst.msk [vmem:[%s904] sm:$0xff] %vm141, %v902
    %v906 = vld [vmem:[%s5] sm:$0xff]
    %v907 = vld [vmem:[%s3] sm:$0xff]
    %v908 = vld [vmem:[%s3 + $0x8] sm:$0xff]
    %v909 = vld [vmem:[%s3 + $0x10] sm:$0xff]
    %v910 = vld [vmem:[%s3 + $0x18] sm:$0xff]
    %v911 = vld [vmem:[%s4] sm:$0x1]
    %v913 = vrot.slane %v906, 5
    %v914 = vsel %vm141, %v913, 0
    %916 = vmatprep.subr.mxu0 0.0
    %917 = vmatpush1.msra.mxu0 %v907
    %918 = vmatprep.subr.mxu0 0.0
    %919 = vmatpush1.msra.mxu0 %v908
    %920 = vmatprep.subr.mxu0 0.0
    %921 = vmatpush1.msra.mxu0 %v909
    %922 = vmatprep.subr.mxu0 0.0
    %923 = vmatpush1.msra.mxu0 %v910
    %924 = vmatprep.subr.mxu0 0.0
    %925 = vmatpush1.msra.mxu0 0.0
    %926 = vmatprep.subr.mxu0 0.0
    %927 = vmatpush1.msra.mxu0 0.0
    %928 = vmatprep.subr.mxu0 0.0
    %929 = vmatpush1.msra.mxu0 0.0
    %930 = vmatprep.subr.mxu0 0.0
    %931 = vmatpush1.msra.mxu0 0.0
    %932 = vmatprep.subr.mxu0 0.0
    %933 = vmatpush1.msra.mxu0 0.0
    %934 = vmatprep.subr.mxu0 0.0
    %935 = vmatpush1.msra.mxu0 0.0
    %936 = vmatprep.subr.mxu0 0.0
    %937 = vmatpush1.msra.mxu0 0.0
    %938 = vmatprep.subr.mxu0 0.0
    %939 = vmatpush1.msra.mxu0 0.0
    %940 = vmatprep.subr.mxu0 0.0
    %941 = vmatpush1.msra.mxu0 0.0
    %942 = vmatprep.subr.mxu0 0.0
    %943 = vmatpush1.msra.mxu0 0.0
    %944 = vmatprep.subr.mxu0 0.0
    %945 = vmatpush1.msra.mxu0 0.0
    %946 = vmatprep.subr.mxu0 0.0
    %947 = vmatpush1.msra.mxu0 0.0
    %948 = vmatprep.subr.mxu0 0.0
    %949 = vmatpush1.msra.mxu0 0.0
    %950 = vmatprep.subr.mxu0 0.0
    %951 = vmatpush1.msra.mxu0 0.0
    %952 = vmatprep.subr.mxu0 0.0
    %953 = vmatpush1.msra.mxu0 0.0
    %954 = vmatprep.subr.mxu0 0.0
    %955 = vmatpush1.msra.mxu0 0.0
    %956 = vmatprep.subr.mxu0 0.0
    %957 = vmatpush1.msra.mxu0 0.0
    %958 = vmatprep.subr.mxu0 0.0
    %959 = vmatpush1.msra.mxu0 0.0
    %960 = vmatprep.subr.mxu0 0.0
    %961 = vmatpush1.msra.mxu0 0.0
    %962 = vmatprep.subr.mxu0 0.0
    %963 = vmatpush1.msra.mxu0 0.0
    %964 = vmatprep.subr.mxu0 0.0
    %965 = vmatpush1.msra.mxu0 0.0
    %966 = vmatprep.subr.mxu0 0.0
    %967 = vmatpush1.msra.mxu0 0.0
    %968 = vmatprep.subr.mxu0 0.0
    %969 = vmatpush1.msra.mxu0 0.0
    %970 = vmatprep.subr.mxu0 0.0
    %971 = vmatpush1.msra.mxu0 0.0
    %972 = vmatprep.subr.mxu0 0.0
    %973 = vmatpush1.msra.mxu0 0.0
    %974 = vmatprep.subr.mxu0 0.0
    %975 = vmatpush1.msra.mxu0 0.0
    %976 = vmatprep.subr.mxu0 0.0
    %977 = vmatpush1.msra.mxu0 0.0
    %978 = vmatprep.subr.mxu0 0.0
    %979 = vmatpush1.msra.mxu0 0.0
    %980 = vmatprep.mubr.f32.mxu0 0.0
    %981 = vmatmul.mubr.f32.gmra.mrb[0].mxu0 %v914
    %v982 = vpop.f32.mrb[0].mxu0
    %v983 = vadd.f32 %v911, %v982
    %v984 = vpop.f32.mrb[0].mxu0
    %985 = vdwg.mxu0
    %vm986 = vcmask 57344
    %987 = vst.msk [vmem:[#allocation2] sm:$0x1] %vm986, %v983
    // Predicated region
    $region22: #{lstm_forward.1} parent=1 // pred_check
      _
    $region23: #{lstm_forward.1} parent=1 // pred_check_branch
      %989 = sbr.rel (0) target = $region25
    $region24: #{lstm_forward.1} parent=1 // pred_region
      _
    $region25: #{lstm_forward.1} parent=1 // pred_fallthru
      _
    // Predicated region
    $region26: #{lstm_forward.1} parent=1 // pred_check
      _
    $region27: #{lstm_forward.1} parent=1 // pred_check_branch
      %991 = sbr.rel (0) target = $region29
    $region28: #{lstm_forward.1} parent=1 // pred_region
      %s993 = ssub.s32 16, 16
      %994 = vsyncadd [#allocation3], %s993
      %s996 = sshll.u32 [#allocation2], 4
      %s997 = int_to_ptr.vmem [resolvable:$true] %s996
      %999 = dma.vmem_to_hbm [thread:$0]  %s997, 16, %s6, [#allocation3]
    $region29: #{lstm_forward.1} parent=1 // pred_fallthru
      _
    // Predicated region
    $region30: #{lstm_forward.1} parent=1 // pred_check
      _
    $region31: #{lstm_forward.1} parent=1 // pred_check_branch
      %1001 = sbr.rel (0) target = $region33
    $region32: #{lstm_forward.1} parent=1 // pred_region
      _
    $region33: #{lstm_forward.1} parent=1 // pred_fallthru
      _
    // Predicated region
    $region34: #{lstm_forward.1} parent=1 // pred_check
      _
    $region35: #{lstm_forward.1} parent=1 // pred_check_branch
      %1003 = sbr.rel (0) target = $region37
    $region36: #{lstm_forward.1} parent=1 // pred_region
      %1004 = dma.done [#allocation3], 16
    $region37: #{lstm_forward.1} parent=1 // pred_fallthru
      _
    %1005 = vsyncpa [#allocation3], 1

</llo_original>
